<compile_context>
chip_gen: v6e
topology: v6e:2x2x1
jax: 0.10.0
libtpu: 0.0.40
codegen_flags: <defaults>
</compile_context>

<pallas_src>
import functools

import jax
import jax.numpy as jnp
from jax.experimental import pallas as pl
from jax.experimental.pallas import tpu as pltpu

SMOOTH = 1e-6
LANES = 128
SUBLANES = 8
ACC_WAYS = 4                       # independent accumulator chains (v7x VALU headroom)
ROW_QUANT = ACC_WAYS * SUBLANES    # 32
BLOCK_BYTES = 4 * 1024 * 1024      # raw bytes per input per pipeline step
VMEM_LIMIT_BYTES = 48 * 1024 * 1024


def _dice_partial_kernel(pred_ref, target_ref, acc_ref, *, rows, block_rows,
                         blocks_per_split):
    """Accumulate sum(p*t) and sum(p)+sum(t) into ACC_WAYS x (8,128) partials."""
    c = pl.program_id(0)   # parallel split (maps to TensorCores on 2-TC chips)
    j = pl.program_id(1)   # reduction step within the split ("arbitrary")

    @pl.when(j == 0)
    def _():
        acc_ref[...] = jnp.zeros_like(acc_ref)

    # Un-clamped logical row offset of this grid point (the index_map clamps the
    # DMA window; this value is what decides masking, so duplicate trailing
    # blocks contribute exactly zero).
    start_row = (c * blocks_per_split + j) * block_rows

    p = pred_ref[...].astype(jnp.float32)
    t = target_ref[...].astype(jnp.float32)

    def accumulate(p, t):
        # Fold (block_rows, 128) into ACC_WAYS independent (8,128) partials per
        # quantity: pure element-wise vreg adds, no in-loop cross-lane XLU work,
        # no single serial accumulation chain.
        inter = jnp.sum((p * t).reshape(-1, ACC_WAYS, SUBLANES, LANES), axis=0)
        both = jnp.sum((p + t).reshape(-1, ACC_WAYS, SUBLANES, LANES), axis=0)
        acc_ref[0] += inter
        acc_ref[1] += both

    full = start_row + block_rows <= rows

    @pl.when(full)
    def _():                       # hot path: no masking cost
        accumulate(p, t)

    @pl.when(jnp.logical_not(full))
    def _():                       # boundary / duplicate block: mask invalid rows
        row_ids = jax.lax.broadcasted_iota(jnp.int32, (block_rows, LANES), 0)
        valid = (start_row + row_ids) < rows
        accumulate(jnp.where(valid, p, 0.0), jnp.where(valid, t, 0.0))


@functools.lru_cache(maxsize=1)
def _num_tensorcores_per_device():
    """2-way grid split only pays off on dual-TC devices (v4/v5p megacore, v7x)."""
    try:
        kind = jax.devices()[0].device_kind.lower()
    except Exception:
        return 1
    if "lite" in kind or "v5e" in kind or "v6e" in kind:
        return 1
    if "v4" in kind or "v5p" in kind or "7" in kind:
        return 2
    return 1


def dice_loss(pred, target, smooth=SMOOTH, *, block_rows=None):
    """pred, target: [B, 1, H, W] -> scalar dice loss (float32)."""
    assert pred.shape == target.shape
    n = pred.size

    # Lane-dense view: (rows, 128).  When n % 128 == 0 this is a pure row-major
    # reshape (no data movement).  Otherwise fall back to a single sum-neutral
    # zero-pad of the tail before reshaping.
    def to_slab(x):
        flat = jnp.reshape(x, (-1,))
        if n % LANES != 0:
            flat = jnp.pad(flat, (0, LANES - n % LANES))
        return jnp.reshape(flat, (-1, LANES))

    p2 = to_slab(pred)
    t2 = to_slab(target)
    rows = p2.shape[0]

    # Block sizing from a byte budget (so bf16/int8 get proportionally more
    # rows), quantized to the accumulator grouping, never much larger than the
    # array itself.
    if block_rows is None:
        itembytes = max(p2.dtype.itemsize, t2.dtype.itemsize)
        budget_rows = max(ROW_QUANT, BLOCK_BYTES // (LANES * itembytes))
        budget_rows = (budget_rows // ROW_QUANT) * ROW_QUANT
        block_rows = min(budget_rows, pl.cdiv(rows, ROW_QUANT) * ROW_QUANT)
    assert block_rows % ROW_QUANT == 0 and block_rows > 0

    num_blocks = pl.cdiv(rows, block_rows)
    num_splits = max(1, min(_num_tensorcores_per_device(), num_blocks))
    blocks_per_split = pl.cdiv(num_blocks, num_splits)

    def in_map(c, j):
        b = c * blocks_per_split + j
        # Clamp so a duplicate trailing grid point never opens a window starting
        # past the array; the kernel fully masks such blocks via start_row.
        return (jnp.minimum(b, num_blocks - 1), 0)

    kernel = functools.partial(
        _dice_partial_kernel, rows=rows, block_rows=block_rows,
        blocks_per_split=blocks_per_split)

    partials = pl.pallas_call(
        kernel,
        out_shape=jax.ShapeDtypeStruct(
            (num_splits, 2, ACC_WAYS, SUBLANES, LANES), jnp.float32),
        grid_spec=pltpu.PrefetchScalarGridSpec(
            num_scalar_prefetch=0,
            grid=(num_splits, blocks_per_split),
            in_specs=[
                pl.BlockSpec((block_rows, LANES), in_map),
                pl.BlockSpec((block_rows, LANES), in_map),
            ],
            out_specs=pl.BlockSpec(
                (None, 2, ACC_WAYS, SUBLANES, LANES),
                lambda c, j: (c, 0, 0, 0, 0)),
        ),
        compiler_params=pltpu.CompilerParams(
            dimension_semantics=("parallel", "arbitrary"),
            vmem_limit_bytes=VMEM_LIMIT_BYTES,
        ),
    )(p2, t2)

    inter = jnp.sum(partials[:, 0])
    both = jnp.sum(partials[:, 1])
    dice = (2.0 * inter + smooth) / (both + smooth)
    return 1.0 - dice


def _reference(pred, target, smooth=SMOOTH):
    pf = pred.reshape(-1).astype(jnp.float32)
    tf = target.reshape(-1).astype(jnp.float32)
    inter = jnp.sum(pf * tf)
    return 1.0 - (2.0 * inter + smooth) / (jnp.sum(pf) + jnp.sum(tf) + smooth)


if __name__ == "__main__":
    key = jax.random.PRNGKey(0)
    k1, k2, k3, k4, k5, k6 = jax.random.split(key, 6)

    # 1) Small shape consistent with the module: [B, 1, H, W]; exercises the
    #    copy-free path with a single masked boundary block.
    B, C, H, W = 2, 1, 16, 16
    pred = jax.nn.sigmoid(jax.random.normal(k1, (B, C, H, W), dtype=jnp.float32))
    target = (jax.random.uniform(k2, (B, C, H, W)) > 0.5).astype(jnp.float32)
    loss = jax.block_until_ready(dice_loss(pred, target))
    ref = _reference(pred, target)
    assert jnp.allclose(loss, ref, atol=1e-5, rtol=1e-5), (loss, ref)

    # 2) Forces multiple reduction steps + the split/clamp/mask machinery
    #    (rows=72, block_rows=32 -> 3 blocks, ragged last block).
    B2, C2, H2, W2 = 2, 1, 72, 64
    pred2 = jax.nn.sigmoid(jax.random.normal(k3, (B2, C2, H2, W2), dtype=jnp.float32))
    target2 = (jax.random.uniform(k4, (B2, C2, H2, W2)) > 0.5).astype(jnp.float32)
    loss2 = jax.block_until_ready(dice_loss(pred2, target2, block_rows=32))
    ref2 = _reference(pred2, target2)
    assert jnp.allclose(loss2, ref2, atol=1e-5, rtol=1e-5), (loss2, ref2)

    # 3) Ragged element count (numel % 128 != 0) -> fallback tail-pad path.
    B3, C3, H3, W3 = 2, 1, 5, 13
    pred3 = jax.nn.sigmoid(jax.random.normal(k5, (B3, C3, H3, W3), dtype=jnp.float32))
    target3 = (jax.random.uniform(k6, (B3, C3, H3, W3)) > 0.5).astype(jnp.float32)
    loss3 = jax.block_until_ready(dice_loss(pred3, target3))
    ref3 = _reference(pred3, target3)
    assert jnp.allclose(loss3, ref3, atol=1e-5, rtol=1e-5), (loss3, ref3)

    print("KERNEL_OK")
</pallas_src>

<mosaic_0001>
module attributes {stable_mosaic.version = 11 : i64} {
  func.func @_dice_partial_kernel(%arg0: i32, %arg1: i32, %arg2: memref<32x128xf32, #tpu.memory_space<vmem>>, %arg3: memref<32x128xf32, #tpu.memory_space<vmem>>, %arg4: memref<1x2x4x8x128xf32, #tpu.memory_space<vmem>>) attributes {dimension_semantics = [#tpu.dimension_semantics<parallel>, #tpu.dimension_semantics<arbitrary>], iteration_bounds = array<i64: 1, 1>, scalar_prefetch = 0 : i64, scratch_operands = 0 : i64, tpu.core_type = #tpu.core_type<tc>, window_params = [{transform_indices = @transform_0, window_bounds = array<i64: 32, 128>}, {transform_indices = @transform_1, window_bounds = array<i64: 32, 128>}, {transform_indices = @transform_2, window_bounds = array<i64: 1, 2, 4, 8, 128>}]} {
    %c0_i32 = arith.constant 0 : i32
    %0 = arith.cmpi eq, %arg1, %c0_i32 : i32
    %1 = arith.extui %0 : i1 to i32
    %c0_i32_0 = arith.constant 0 : i32
    %2 = arith.cmpi ne, %1, %c0_i32_0 : i32
    scf.if %2 {
      %cst = arith.constant 0.000000e+00 : f32
      %15 = vector.broadcast %cst : f32 to vector<2x4x8x128xf32>
      %c0_7 = arith.constant 0 : index
      %c0_8 = arith.constant 0 : index
      %c0_9 = arith.constant 0 : index
      %c0_10 = arith.constant 0 : index
      %c0_11 = arith.constant 0 : index
      %16 = vector.load %arg4[%c0_7, %c0_8, %c0_9, %c0_10, %c0_11] : memref<1x2x4x8x128xf32, #tpu.memory_space<vmem>>, vector<1x2x4x8x128xf32>
      %17 = vector.shape_cast %16 : vector<1x2x4x8x128xf32> to vector<2x4x8x128xf32>
      %18 = vector.shape_cast %15 : vector<2x4x8x128xf32> to vector<1x2x4x8x128xf32>
      tpu.vector_store %arg4[%c0_7, %c0_8, %c0_9, %c0_10, %c0_11], %18 {strides = array<i32>} : memref<1x2x4x8x128xf32, #tpu.memory_space<vmem>>, vector<1x2x4x8x128xf32>,
    } else {
    }
    %c1_i32 = arith.constant 1 : i32
    %3 = arith.muli %arg0, %c1_i32 : i32
    %4 = arith.addi %3, %arg1 : i32
    %c32_i32 = arith.constant 32 : i32
    %5 = arith.muli %4, %c32_i32 : i32
    %c0 = arith.constant 0 : index
    %c0_1 = arith.constant 0 : index
    %6 = vector.load %arg2[%c0, %c0_1] : memref<32x128xf32, #tpu.memory_space<vmem>>, vector<32x128xf32>
    %c0_2 = arith.constant 0 : index
    %c0_3 = arith.constant 0 : index
    %7 = vector.load %arg3[%c0_2, %c0_3] : memref<32x128xf32, #tpu.memory_space<vmem>>, vector<32x128xf32>
    %c32_i32_4 = arith.constant 32 : i32
    %8 = arith.addi %5, %c32_i32_4 : i32
    %c4_i32 = arith.constant 4 : i32
    %9 = arith.cmpi sle, %8, %c4_i32 : i32
    %10 = arith.extui %9 : i1 to i32
    %c0_i32_5 = arith.constant 0 : i32
    %11 = arith.cmpi ne, %10, %c0_i32_5 : i32
    scf.if %11 {
      %15 = arith.mulf %6, %7 : vector<32x128xf32>
      %16 = vector.shape_cast %15 : vector<32x128xf32> to vector<1x4x8x128xf32>
      %cst = arith.constant dense<0.000000e+00> : vector<4x8x128xf32>
      %17 = vector.multi_reduction <add>, %16, %cst [0] : vector<1x4x8x128xf32> to vector<4x8x128xf32>
      %18 = arith.addf %6, %7 : vector<32x128xf32>
      %19 = vector.shape_cast %18 : vector<32x128xf32> to vector<1x4x8x128xf32>
      %cst_7 = arith.constant dense<0.000000e+00> : vector<4x8x128xf32>
      %20 = vector.multi_reduction <add>, %19, %cst_7 [0] : vector<1x4x8x128xf32> to vector<4x8x128xf32>
      %c0_8 = arith.constant 0 : index
      %c0_9 = arith.constant 0 : index
      %c0_10 = arith.constant 0 : index
      %c0_11 = arith.constant 0 : index
      %c0_12 = arith.constant 0 : index
      %21 = vector.load %arg4[%c0_8, %c0_9, %c0_10, %c0_11, %c0_12] : memref<1x2x4x8x128xf32, #tpu.memory_space<vmem>>, vector<1x1x4x8x128xf32>
      %22 = vector.shape_cast %21 : vector<1x1x4x8x128xf32> to vector<4x8x128xf32>
      %23 = arith.addf %22, %17 : vector<4x8x128xf32>
      %c0_13 = arith.constant 0 : index
      %c0_14 = arith.constant 0 : index
      %c0_15 = arith.constant 0 : index
      %c0_16 = arith.constant 0 : index
      %c0_17 = arith.constant 0 : index
      %24 = vector.load %arg4[%c0_13, %c0_14, %c0_15, %c0_16, %c0_17] : memref<1x2x4x8x128xf32, #tpu.memory_space<vmem>>, vector<1x1x4x8x128xf32>
      %25 = vector.shape_cast %24 : vector<1x1x4x8x128xf32> to vector<4x8x128xf32>
      %26 = vector.shape_cast %23 : vector<4x8x128xf32> to vector<1x1x4x8x128xf32>
      tpu.vector_store %arg4[%c0_13, %c0_14, %c0_15, %c0_16, %c0_17], %26 {strides = array<i32>} : memref<1x2x4x8x128xf32, #tpu.memory_space<vmem>>, vector<1x1x4x8x128xf32>,
      %c0_18 = arith.constant 0 : index
      %c1 = arith.constant 1 : index
      %c0_19 = arith.constant 0 : index
      %c0_20 = arith.constant 0 : index
      %c0_21 = arith.constant 0 : index
      %27 = vector.load %arg4[%c0_18, %c1, %c0_19, %c0_20, %c0_21] : memref<1x2x4x8x128xf32, #tpu.memory_space<vmem>>, vector<1x1x4x8x128xf32>
      %28 = vector.shape_cast %27 : vector<1x1x4x8x128xf32> to vector<4x8x128xf32>
      %29 = arith.addf %28, %20 : vector<4x8x128xf32>
      %c0_22 = arith.constant 0 : index
      %c1_23 = arith.constant 1 : index
      %c0_24 = arith.constant 0 : index
      %c0_25 = arith.constant 0 : index
      %c0_26 = arith.constant 0 : index
      %30 = vector.load %arg4[%c0_22, %c1_23, %c0_24, %c0_25, %c0_26] : memref<1x2x4x8x128xf32, #tpu.memory_space<vmem>>, vector<1x1x4x8x128xf32>
      %31 = vector.shape_cast %30 : vector<1x1x4x8x128xf32> to vector<4x8x128xf32>
      %32 = vector.shape_cast %29 : vector<4x8x128xf32> to vector<1x1x4x8x128xf32>
      tpu.vector_store %arg4[%c0_22, %c1_23, %c0_24, %c0_25, %c0_26], %32 {strides = array<i32>} : memref<1x2x4x8x128xf32, #tpu.memory_space<vmem>>, vector<1x1x4x8x128xf32>,
    } else {
    }
    %true = arith.constant true
    %12 = arith.xori %9, %true : i1
    %13 = arith.extui %12 : i1 to i32
    %c0_i32_6 = arith.constant 0 : i32
    %14 = arith.cmpi ne, %13, %c0_i32_6 : i32
    scf.if %14 {
      %15 = tpu.iota {dimensions = array<i32: 0>} : vector<32x128xi32>
      %16 = vector.broadcast %5 : i32 to vector<32x128xi32>
      %17 = arith.addi %16, %15 : vector<32x128xi32>
      %c4_i32_7 = arith.constant 4 : i32
      %18 = vector.broadcast %c4_i32_7 : i32 to vector<32x128xi32>
      %19 = arith.cmpi slt, %17, %18 : vector<32x128xi32>
      %cst = arith.constant 0.000000e+00 : f32
      %20 = vector.broadcast %cst : f32 to vector<32x128xf32>
      %21 = arith.select %19, %6, %20 : vector<32x128xi1>, vector<32x128xf32>
      %cst_8 = arith.constant 0.000000e+00 : f32
      %22 = vector.broadcast %cst_8 : f32 to vector<32x128xf32>
      %23 = arith.select %19, %7, %22 : vector<32x128xi1>, vector<32x128xf32>
      %24 = arith.mulf %21, %23 : vector<32x128xf32>
      %25 = vector.shape_cast %24 : vector<32x128xf32> to vector<1x4x8x128xf32>
      %cst_9 = arith.constant dense<0.000000e+00> : vector<4x8x128xf32>
      %26 = vector.multi_reduction <add>, %25, %cst_9 [0] : vector<1x4x8x128xf32> to vector<4x8x128xf32>
      %27 = arith.addf %21, %23 : vector<32x128xf32>
      %28 = vector.shape_cast %27 : vector<32x128xf32> to vector<1x4x8x128xf32>
      %cst_10 = arith.constant dense<0.000000e+00> : vector<4x8x128xf32>
      %29 = vector.multi_reduction <add>, %28, %cst_10 [0] : vector<1x4x8x128xf32> to vector<4x8x128xf32>
      %c0_11 = arith.constant 0 : index
      %c0_12 = arith.constant 0 : index
      %c0_13 = arith.constant 0 : index
      %c0_14 = arith.constant 0 : index
      %c0_15 = arith.constant 0 : index
      %30 = vector.load %arg4[%c0_11, %c0_12, %c0_13, %c0_14, %c0_15] : memref<1x2x4x8x128xf32, #tpu.memory_space<vmem>>, vector<1x1x4x8x128xf32>
      %31 = vector.shape_cast %30 : vector<1x1x4x8x128xf32> to vector<4x8x128xf32>
      %32 = arith.addf %31, %26 : vector<4x8x128xf32>
      %c0_16 = arith.constant 0 : index
      %c0_17 = arith.constant 0 : index
      %c0_18 = arith.constant 0 : index
      %c0_19 = arith.constant 0 : index
      %c0_20 = arith.constant 0 : index
      %33 = vector.load %arg4[%c0_16, %c0_17, %c0_18, %c0_19, %c0_20] : memref<1x2x4x8x128xf32, #tpu.memory_space<vmem>>, vector<1x1x4x8x128xf32>
      %34 = vector.shape_cast %33 : vector<1x1x4x8x128xf32> to vector<4x8x128xf32>
      %35 = vector.shape_cast %32 : vector<4x8x128xf32> to vector<1x1x4x8x128xf32>
      tpu.vector_store %arg4[%c0_16, %c0_17, %c0_18, %c0_19, %c0_20], %35 {strides = array<i32>} : memref<1x2x4x8x128xf32, #tpu.memory_space<vmem>>, vector<1x1x4x8x128xf32>,
      %c0_21 = arith.constant 0 : index
      %c1 = arith.constant 1 : index
      %c0_22 = arith.constant 0 : index
      %c0_23 = arith.constant 0 : index
      %c0_24 = arith.constant 0 : index
      %36 = vector.load %arg4[%c0_21, %c1, %c0_22, %c0_23, %c0_24] : memref<1x2x4x8x128xf32, #tpu.memory_space<vmem>>, vector<1x1x4x8x128xf32>
      %37 = vector.shape_cast %36 : vector<1x1x4x8x128xf32> to vector<4x8x128xf32>
      %38 = arith.addf %37, %29 : vector<4x8x128xf32>
      %c0_25 = arith.constant 0 : index
      %c1_26 = arith.constant 1 : index
      %c0_27 = arith.constant 0 : index
      %c0_28 = arith.constant 0 : index
      %c0_29 = arith.constant 0 : index
      %39 = vector.load %arg4[%c0_25, %c1_26, %c0_27, %c0_28, %c0_29] : memref<1x2x4x8x128xf32, #tpu.memory_space<vmem>>, vector<1x1x4x8x128xf32>
      %40 = vector.shape_cast %39 : vector<1x1x4x8x128xf32> to vector<4x8x128xf32>
      %41 = vector.shape_cast %38 : vector<4x8x128xf32> to vector<1x1x4x8x128xf32>
      tpu.vector_store %arg4[%c0_25, %c1_26, %c0_27, %c0_28, %c0_29], %41 {strides = array<i32>} : memref<1x2x4x8x128xf32, #tpu.memory_space<vmem>>, vector<1x1x4x8x128xf32>,
    } else {
    }
    return
  }
  func.func @transform_0(%arg0: i32, %arg1: i32) -> (i32, i32) {
    %c1_i32 = arith.constant 1 : i32
    %0 = arith.muli %arg0, %c1_i32 : i32
    %1 = arith.addi %0, %arg1 : i32
    %c0_i32 = arith.constant 0 : i32
    %2 = arith.minsi %1, %c0_i32 : i32
    %c0_i32_0 = arith.constant 0 : i32
    %c0_i32_1 = arith.constant 0 : i32
    return %2, %c0_i32_0 : i32, i32
  }
  func.func @transform_1(%arg0: i32, %arg1: i32) -> (i32, i32) {
    %c1_i32 = arith.constant 1 : i32
    %0 = arith.muli %arg0, %c1_i32 : i32
    %1 = arith.addi %0, %arg1 : i32
    %c0_i32 = arith.constant 0 : i32
    %2 = arith.minsi %1, %c0_i32 : i32
    %c0_i32_0 = arith.constant 0 : i32
    %c0_i32_1 = arith.constant 0 : i32
    return %2, %c0_i32_0 : i32, i32
  }
  func.func @transform_2(%arg0: i32, %arg1: i32) -> (i32, i32, i32, i32, i32) {
    %c0_i32 = arith.constant 0 : i32
    %c0_i32_0 = arith.constant 0 : i32
    %c0_i32_1 = arith.constant 0 : i32
    %c0_i32_2 = arith.constant 0 : i32
    %c0_i32_3 = arith.constant 0 : i32
    return %arg0, %c0_i32, %c0_i32_0, %c0_i32_1, %c0_i32_2 : i32, i32, i32, i32, i32
  }
}

</mosaic_0001>

<llo_original>
// kernel: tpu_custom_call.1
$region0: #{tpu_custom_call.1}
  #allocation0 [shape = 'u32[]', space=smem, size = 0x4, offset = 0x4, fixed_abs, tag = 'smem constant byte address 0x4 - core index']
  #allocation1 [shape = 'u32[144,128]{1,0:T(1,128)}', space=vmem, size = 0x12000, scoped, tag = 'internal scratch']
  %s0 = inlined_call_operand.hbm [shape: f32[4,128], index: 0, kind: input, shape index: {}]
  %s1 = inlined_call_operand.hbm [shape: f32[4,128], index: 1, kind: input, shape index: {}]
  %s2 = inlined_call_operand.hbm [shape: f32[1,2,4,8,128], index: 2, kind: output, shape index: {}]
  %s3 = sld [smem:[#allocation0]]
  $region38: #{tpu_custom_call.1} parent=0
    _
  %s5 = ssub.s32 1, %s3
  %s6 = scalar_select 0, %s5, %s3
  $region1: #{tpu_custom_call.1} parent=0
    #allocation2 [shape = 'u8[16384]{0}', space=vmem, size = 0x4000, scoped, tag = 'input window, operand 0, single buffered']
    #allocation3 [shape = 's32[1]{0}', space=sflag, size = 0x4, scoped, tag = 'scoped memory for tpu_custom_call.1']
    #allocation4 [shape = 's32[1]{0}', space=sflag, size = 0x4, scoped, tag = 'scoped memory for tpu_custom_call.1']
    #allocation5 [shape = 'u8[16384]{0}', space=vmem, size = 0x4000, scoped, tag = 'input window, operand 1, single buffered']
    #allocation6 [shape = 's32[1]{0}', space=sflag, size = 0x4, scoped, tag = 'scoped memory for tpu_custom_call.1']
    #allocation7 [shape = 'u8[32768]{0}', space=vmem, size = 0x8000, scoped, tag = 'output window, operand 0, single buffered']
    %7 = vsyncpa [#allocation3], 0
    %8 = vsyncpa [#allocation6], 0
    %9 = vsyncpa [#allocation4], 0
    // Predicated region
    $region2: #{tpu_custom_call.1} parent=1 // pred_check
      _
    $region3: #{tpu_custom_call.1} parent=1 // pred_check_branch
      %11 = sbr.rel (0) target = $region5
    $region4: #{tpu_custom_call.1} parent=1 // pred_region
      %s12 = sadd.s32 0, 0
      %p13 = scmp.lt.s32.totalorder %s12, 0
      %s14 = scalar_select %p13, %s12, 0
      %s15 = smul.u32 8, %s14
      %s16 = ssub.s32 1, %s15
      %s17 = smul.u32 64, %s16
      %s19 = ssub.s32 512, %s17
      %20 = vsyncadd [#allocation3], %s19
      %p21 = scmp.ne.s32.totalorder 0, %s17
      %s22 = smul.addr %s15, 64
      %s23 = scalar_lea.hbm %s0, %s22
      %s24 = smul.u32 4, %s16
      %s25 = sshll.u32 [#allocation2], 4
      %s26 = int_to_ptr.vmem [resolvable:$true] %s25
      %s27 = sshll.u32 %s24, 4
      %31 = dma.hbm_to_vmem [thread:$0]  (%p21), %s23, %s27, %s26, [#allocation3], 64, 64, 4
    $region5: #{tpu_custom_call.1} parent=1 // pred_fallthru
      _
    // Predicated region
    $region6: #{tpu_custom_call.1} parent=1 // pred_check
      _
    $region7: #{tpu_custom_call.1} parent=1 // pred_check_branch
      %33 = sbr.rel (0) target = $region9
    $region8: #{tpu_custom_call.1} parent=1 // pred_region
      %s34 = sadd.s32 0, 0
      %p35 = scmp.lt.s32.totalorder %s34, 0
      %s36 = scalar_select %p35, %s34, 0
      %s37 = smul.u32 8, %s36
      %s38 = ssub.s32 1, %s37
      %s39 = smul.u32 64, %s38
      %s41 = ssub.s32 512, %s39
      %42 = vsyncadd [#allocation6], %s41
      %p43 = scmp.ne.s32.totalorder 0, %s39
      %s44 = smul.addr %s37, 64
      %s45 = scalar_lea.hbm %s1, %s44
      %s46 = smul.u32 4, %s38
      %s47 = sshll.u32 [#allocation5], 4
      %s48 = int_to_ptr.vmem [resolvable:$true] %s47
      %s49 = sshll.u32 %s46, 4
      %53 = dma.hbm_to_vmem [thread:$0]  (%p43), %s45, %s49, %s48, [#allocation6], 64, 64, 4
    $region9: #{tpu_custom_call.1} parent=1 // pred_fallthru
      _
    // Predicated region
    $region10: #{tpu_custom_call.1} parent=1 // pred_check
      _
    $region11: #{tpu_custom_call.1} parent=1 // pred_check_branch
      %55 = sbr.rel (0) target = $region13
    $region12: #{tpu_custom_call.1} parent=1 // pred_region
      %56 = dma.done [#allocation3], 512
    $region13: #{tpu_custom_call.1} parent=1 // pred_fallthru
      _
    // Predicated region
    $region14: #{tpu_custom_call.1} parent=1 // pred_check
      _
    $region15: #{tpu_custom_call.1} parent=1 // pred_check_branch
      %58 = sbr.rel (0) target = $region17
    $region16: #{tpu_custom_call.1} parent=1 // pred_region
      %59 = dma.done [#allocation6], 512
    $region17: #{tpu_custom_call.1} parent=1 // pred_fallthru
      _
    %s60 = sadd.s32 0, 0
    %p61 = scmp.lt.s32.totalorder %s60, 0
    %s62 = scalar_select %p61, %s60, 0
    %s63 = smul.u32 8, %s62
    %s64 = ssub.s32 1, %s63
    %s65 = smul.u32 64, %s64
    %s66 = sadd.s32 0, 0
    %p67 = scmp.lt.s32.totalorder %s66, 0
    %s68 = scalar_select %p67, %s66, 0
    %s69 = smul.u32 8, %s68
    %s70 = ssub.s32 1, %s69
    %s71 = smul.u32 64, %s70
    %p72 = scmp.eq.s32.totalorder 0, 0
    // Predicated region
    $region18: #{tpu_custom_call.1} parent=1 // pred_check
      %p73 = pneg %p72
    $region19: #{tpu_custom_call.1} parent=1 // pred_check_branch
      %75 = sbr.rel (%p73) target = $region21
    $region20: #{tpu_custom_call.1} parent=1 // pred_region
      %76 = vst [vmem:[#allocation7] sm:$0xff] 0.0
      %77 = vst [vmem:[#allocation7 + $0x8] sm:$0xff] 0.0
      %78 = vst [vmem:[#allocation7 + $0x10] sm:$0xff] 0.0
      %79 = vst [vmem:[#allocation7 + $0x18] sm:$0xff] 0.0
      %80 = vst [vmem:[#allocation7 + $0x20] sm:$0xff] 0.0
      %81 = vst [vmem:[#allocation7 + $0x28] sm:$0xff] 0.0
      %82 = vst [vmem:[#allocation7 + $0x30] sm:$0xff] 0.0
      %83 = vst [vmem:[#allocation7 + $0x38] sm:$0xff] 0.0
    $region21: #{tpu_custom_call.1} parent=1 // pred_fallthru
      _
    %s84 = sadd.s32 0, 0
    %s85 = smul.u32 %s84, 32
    %v86 = vld [vmem:[#allocation2] sm:$0xff]
    %v87 = vld [vmem:[#allocation2 + $0x8] sm:$0xff]
    %v88 = vld [vmem:[#allocation2 + $0x10] sm:$0xff]
    %v89 = vld [vmem:[#allocation2 + $0x18] sm:$0xff]
    %v90 = vld [vmem:[#allocation5] sm:$0xff]
    %v91 = vld [vmem:[#allocation5 + $0x8] sm:$0xff]
    %v92 = vld [vmem:[#allocation5 + $0x10] sm:$0xff]
    %v93 = vld [vmem:[#allocation5 + $0x18] sm:$0xff]
    %s94 = sadd.s32 %s85, 32
    %p95 = scmp.le.s32.totalorder %s94, 4
    // Predicated region
    $region22: #{tpu_custom_call.1} parent=1 // pred_check
      %p96 = pneg %p95
    $region23: #{tpu_custom_call.1} parent=1 // pred_check_branch
      %98 = sbr.rel (%p96) target = $region25
    $region24: #{tpu_custom_call.1} parent=1 // pred_region
      %v99 = vmul.f32 %v86, %v90
      %v100 = vmul.f32 %v87, %v91
      %v101 = vmul.f32 %v88, %v92
      %v102 = vmul.f32 %v89, %v93
      %v103 = vadd.f32 %v99, 0.0
      %v104 = vadd.f32 %v100, 0.0
      %v105 = vadd.f32 %v101, 0.0
      %v106 = vadd.f32 %v102, 0.0
      %v107 = vadd.f32 %v86, %v90
      %v108 = vadd.f32 %v87, %v91
      %v109 = vadd.f32 %v88, %v92
      %v110 = vadd.f32 %v89, %v93
      %v111 = vadd.f32 %v107, 0.0
      %v112 = vadd.f32 %v108, 0.0
      %v113 = vadd.f32 %v109, 0.0
      %v114 = vadd.f32 %v110, 0.0
      %v115 = vld [vmem:[#allocation7] sm:$0xff]
      %v116 = vld [vmem:[#allocation7 + $0x8] sm:$0xff]
      %v117 = vld [vmem:[#allocation7 + $0x10] sm:$0xff]
      %v118 = vld [vmem:[#allocation7 + $0x18] sm:$0xff]
      %v119 = vadd.f32 %v115, %v103
      %v120 = vadd.f32 %v116, %v104
      %v121 = vadd.f32 %v117, %v105
      %v122 = vadd.f32 %v118, %v106
      %123 = vst [vmem:[#allocation7] sm:$0xff] %v119
      %124 = vst [vmem:[#allocation7 + $0x8] sm:$0xff] %v120
      %125 = vst [vmem:[#allocation7 + $0x10] sm:$0xff] %v121
      %126 = vst [vmem:[#allocation7 + $0x18] sm:$0xff] %v122
      %s127 = scalar_lea.vmem [#allocation7], 32
      %v128 = vld [vmem:[%s127] sm:$0xff]
      %v129 = vld [vmem:[%s127 + $0x8] sm:$0xff]
      %v130 = vld [vmem:[%s127 + $0x10] sm:$0xff]
      %v131 = vld [vmem:[%s127 + $0x18] sm:$0xff]
      %v132 = vadd.f32 %v128, %v111
      %v133 = vadd.f32 %v129, %v112
      %v134 = vadd.f32 %v130, %v113
      %v135 = vadd.f32 %v131, %v114
      %136 = vst [vmem:[%s127] sm:$0xff] %v132
      %137 = vst [vmem:[%s127 + $0x8] sm:$0xff] %v133
      %138 = vst [vmem:[%s127 + $0x10] sm:$0xff] %v134
      %139 = vst [vmem:[%s127 + $0x18] sm:$0xff] %v135
    $region25: #{tpu_custom_call.1} parent=1 // pred_fallthru
      _
    %p140 = scmp.gt.s32.totalorder %s94, 4
    // Predicated region
    $region26: #{tpu_custom_call.1} parent=1 // pred_check
      %p141 = pneg %p140
    $region27: #{tpu_custom_call.1} parent=1 // pred_check_branch
      %143 = sbr.rel (%p141) target = $region29
    $region28: #{tpu_custom_call.1} parent=1 // pred_region
      %v144 = vlaneseq
      %v145 = vshrl.u32 %v144, 7
      %v146 = vadd.s32 %v145, 8
      %v147 = vadd.s32 %v145, 16
      %v148 = vadd.s32 %v145, 24
      %v149 = vstv %s85
      %v150 = vadd.s32 %v149, %v145
      %v151 = vadd.s32 %v149, %v146
      %v152 = vadd.s32 %v149, %v147
      %v153 = vadd.s32 %v149, %v148
      %vm154 = vcmp.lt.s32.totalorder %v150, 4
      %vm155 = vcmp.lt.s32.totalorder %v151, 4
      %vm156 = vcmp.lt.s32.totalorder %v152, 4
      %vm157 = vcmp.lt.s32.totalorder %v153, 4
      %v158 = vsel %vm154, %v86, 0.0
      %v159 = vsel %vm155, %v87, 0.0
      %v160 = vsel %vm156, %v88, 0.0
      %v161 = vsel %vm157, %v89, 0.0
      %v162 = vsel %vm154, %v90, 0.0
      %v163 = vsel %vm155, %v91, 0.0
      %v164 = vsel %vm156, %v92, 0.0
      %v165 = vsel %vm157, %v93, 0.0
      %v166 = vmul.f32 %v158, %v162
      %v167 = vmul.f32 %v159, %v163
      %v168 = vmul.f32 %v160, %v164
      %v169 = vmul.f32 %v161, %v165
      %v170 = vadd.f32 %v166, 0.0
      %v171 = vadd.f32 %v167, 0.0
      %v172 = vadd.f32 %v168, 0.0
      %v173 = vadd.f32 %v169, 0.0
      %v174 = vadd.f32 %v158, %v162
      %v175 = vadd.f32 %v159, %v163
      %v176 = vadd.f32 %v160, %v164
      %v177 = vadd.f32 %v161, %v165
      %v178 = vadd.f32 %v174, 0.0
      %v179 = vadd.f32 %v175, 0.0
      %v180 = vadd.f32 %v176, 0.0
      %v181 = vadd.f32 %v177, 0.0
      %v182 = vld [vmem:[#allocation7] sm:$0xff]
      %v183 = vld [vmem:[#allocation7 + $0x8] sm:$0xff]
      %v184 = vld [vmem:[#allocation7 + $0x10] sm:$0xff]
      %v185 = vld [vmem:[#allocation7 + $0x18] sm:$0xff]
      %v186 = vadd.f32 %v182, %v170
      %v187 = vadd.f32 %v183, %v171
      %v188 = vadd.f32 %v184, %v172
      %v189 = vadd.f32 %v185, %v173
      %190 = vst [vmem:[#allocation7] sm:$0xff] %v186
      %191 = vst [vmem:[#allocation7 + $0x8] sm:$0xff] %v187
      %192 = vst [vmem:[#allocation7 + $0x10] sm:$0xff] %v188
      %193 = vst [vmem:[#allocation7 + $0x18] sm:$0xff] %v189
      %s194 = scalar_lea.vmem [#allocation7], 32
      %v195 = vld [vmem:[%s194] sm:$0xff]
      %v196 = vld [vmem:[%s194 + $0x8] sm:$0xff]
      %v197 = vld [vmem:[%s194 + $0x10] sm:$0xff]
      %v198 = vld [vmem:[%s194 + $0x18] sm:$0xff]
      %v199 = vadd.f32 %v195, %v178
      %v200 = vadd.f32 %v196, %v179
      %v201 = vadd.f32 %v197, %v180
      %v202 = vadd.f32 %v198, %v181
      %203 = vst [vmem:[%s194] sm:$0xff] %v199
      %204 = vst [vmem:[%s194 + $0x8] sm:$0xff] %v200
      %205 = vst [vmem:[%s194 + $0x10] sm:$0xff] %v201
      %206 = vst [vmem:[%s194 + $0x18] sm:$0xff] %v202
    $region29: #{tpu_custom_call.1} parent=1 // pred_fallthru
      _
    // Predicated region
    $region30: #{tpu_custom_call.1} parent=1 // pred_check
      _
    $region31: #{tpu_custom_call.1} parent=1 // pred_check_branch
      %208 = sbr.rel (0) target = $region33
    $region32: #{tpu_custom_call.1} parent=1 // pred_region
      %s210 = ssub.s32 1024, 1024
      %211 = vsyncadd [#allocation4], %s210
      %s212 = sshll.u32 [#allocation7], 4
      %s213 = int_to_ptr.vmem [resolvable:$true] %s212
      %218 = dma.vmem_to_hbm [thread:$0]  %s213, 1024, %s2, [#allocation4], 128, 128, 8
    $region33: #{tpu_custom_call.1} parent=1 // pred_fallthru
      _
    // Predicated region
    $region34: #{tpu_custom_call.1} parent=1 // pred_check
      _
    $region35: #{tpu_custom_call.1} parent=1 // pred_check_branch
      %220 = sbr.rel (0) target = $region37
    $region36: #{tpu_custom_call.1} parent=1 // pred_region
      %221 = dma.done [#allocation4], 1024
    $region37: #{tpu_custom_call.1} parent=1 // pred_fallthru
      _
    %222 = vsyncpa [#allocation3], 1
    %223 = vsyncpa [#allocation6], 1
    %224 = vsyncpa [#allocation4], 1

</llo_original>
